<compile_context>
chip_gen: v5e
topology: v5e:2x2
jax: 0.10.0
libtpu: 0.0.40
codegen_flags: <defaults>
</compile_context>

<pallas_src>
import functools

import jax
import jax.numpy as jnp
import numpy as np
from jax.experimental import pallas as pl
from jax.experimental.pallas import tpu as pltpu


_VMEM_LIMIT = 32 * 1024 * 1024


def _sigmoid(x):
    return 1.0 / (1.0 + jnp.exp(-x))


# --------------------------------------------------------------------------
# Kernel A: CAM path for BOTH branches, pooled-first, (B, nc, K) output.
# Inputs are channel-major (B, C, N) raw views, pool matrix / weights bf16.
# --------------------------------------------------------------------------
def _cam_dual_kernel(x_ref, y_ref, pt_ref, wt_ref, b_ref, o_ref):
    C = x_ref.shape[1]
    xy = jnp.concatenate([x_ref[0], y_ref[0]], axis=0).astype(jnp.bfloat16)  # (2C, N)
    # One pooling contraction for both branches: (2C, N) x (K, N) over N -> (2C, K)
    pooled = jax.lax.dot_general(xy, pt_ref[...], (((1,), (1,)), ((), ())),
                                 preferred_element_type=jnp.float32)
    px = pooled[:C].astype(jnp.bfloat16)                                     # (C, K)
    py = pooled[C:].astype(jnp.bfloat16)
    cx = jnp.dot(wt_ref[0], px, preferred_element_type=jnp.float32) + b_ref[0]
    cy = jnp.dot(wt_ref[1], py, preferred_element_type=jnp.float32) + b_ref[1]
    o_ref[0] = _sigmoid(cx) + _sigmoid(cy)                                   # (nc, K)


def cam_pool_sigmoid_dual(x_cn, y_cn, pool_t, w_cam_t, b_cam):
    B, C, N = x_cn.shape
    nc = w_cam_t.shape[1]
    K = pool_t.shape[0]
    return pl.pallas_call(
        _cam_dual_kernel,
        out_shape=jax.ShapeDtypeStruct((B, nc, K), jnp.float32),
        grid=(B,),
        in_specs=[
            pl.BlockSpec((1, C, N), lambda b: (b, 0, 0)),
            pl.BlockSpec((1, C, N), lambda b: (b, 0, 0)),
            pl.BlockSpec((K, N), lambda b: (0, 0)),
            pl.BlockSpec((2, nc, C), lambda b: (0, 0, 0)),
            pl.BlockSpec((2, nc, 1), lambda b: (0, 0, 0)),
        ],
        out_specs=pl.BlockSpec((1, nc, K), lambda b: (b, 0, 0)),
        compiler_params=pltpu.CompilerParams(
            dimension_semantics=("parallel",),
            vmem_limit_bytes=_VMEM_LIMIT),
    )(x_cn, y_cn, pool_t, w_cam_t, b_cam)


# --------------------------------------------------------------------------
# Kernel B: fused MAttention + conv_out + BN(eval) + ReLU for both branches,
# plus the final out = out_x + out_y.  grid=(B,), weights resident in VMEM.
# --------------------------------------------------------------------------
def _branch_attn_conv(x_nc, wqkv, wproj, bproj, wout, bn_sc, bn_sh, proj_scr,
                      *, num_heads, head_dim, r):
    C = num_heads * head_dim
    xb = x_nc.astype(jnp.bfloat16)                                          # (N, C)
    # Merged q|k|v projection (softmax scale pre-folded into the q columns).
    qkv = jnp.dot(xb, wqkv, preferred_element_type=jnp.float32)             # (N, 3C)

    ctx_parts = []
    for h in range(num_heads):
        lo = h * head_dim
        qh = qkv[:, lo:lo + head_dim].astype(jnp.bfloat16)
        kh = qkv[:, C + lo:C + lo + head_dim].astype(jnp.bfloat16)
        vh = qkv[:, 2 * C + lo:2 * C + lo + head_dim].astype(jnp.bfloat16)
        s = jax.lax.dot_general(qh, kh, (((1,), (1,)), ((), ())),
                                preferred_element_type=jnp.float32)          # (N, N)
        m = jnp.max(s, axis=-1, keepdims=True)
        e = jnp.exp(s - m)
        inv = pl.reciprocal(jnp.sum(e, axis=-1, keepdims=True), approx=True)
        p = (e * inv).astype(jnp.bfloat16)
        ctx_parts.append(jnp.dot(p, vh, preferred_element_type=jnp.float32))  # (N, hd)
    ctx = jnp.concatenate(ctx_parts, axis=-1).astype(jnp.bfloat16)           # (N, C)
    proj = jnp.dot(ctx, wproj, preferred_element_type=jnp.float32) + bproj   # (N, C)

    # PyTorch raw reshape (N, C) -> (C, N): row c of the (C, N) view is the set
    # of proj rows {c*r + q : q=0..r-1}.  Gather each q via a sublane-strided
    # load from the VMEM scratch, concatenate along lanes.
    proj_scr[...] = proj
    a_cn = jnp.concatenate(
        [proj_scr[pl.ds(q, C, stride=r), :] for q in range(r)], axis=1
    ).astype(jnp.bfloat16)                                                   # (C, N)

    z = jnp.dot(wout, a_cn, preferred_element_type=jnp.float32)              # (C, N)
    return jnp.maximum(z * bn_sc + bn_sh, 0.0)


def _fused_attn_conv_kernel(x_ref, y_ref, wqkv_ref, wproj_ref, bproj_ref,
                            wout_ref, bnsc_ref, bnsh_ref, o_ref, proj_scr,
                            *, num_heads, head_dim, r):
    branch = functools.partial(_branch_attn_conv, num_heads=num_heads,
                               head_dim=head_dim, r=r)
    ox = branch(x_ref[0], wqkv_ref[0], wproj_ref[0], bproj_ref[0],
                wout_ref[0], bnsc_ref[0], bnsh_ref[0], proj_scr)
    oy = branch(y_ref[0], wqkv_ref[1], wproj_ref[1], bproj_ref[1],
                wout_ref[1], bnsc_ref[1], bnsh_ref[1], proj_scr)
    o_ref[0] = ox + oy


def fused_mattn_conv_bn_relu_add(x_nc, y_nc, prep, num_heads):
    B, N, C = x_nc.shape
    head_dim = C // num_heads
    r = N // C
    kernel = functools.partial(_fused_attn_conv_kernel, num_heads=num_heads,
                               head_dim=head_dim, r=r)
    return pl.pallas_call(
        kernel,
        out_shape=jax.ShapeDtypeStruct((B, C, N), jnp.float32),
        grid=(B,),
        in_specs=[
            pl.BlockSpec((1, N, C), lambda b: (b, 0, 0)),
            pl.BlockSpec((1, N, C), lambda b: (b, 0, 0)),
            pl.BlockSpec((2, C, 3 * C), lambda b: (0, 0, 0)),
            pl.BlockSpec((2, C, C), lambda b: (0, 0, 0)),
            pl.BlockSpec((2, 1, C), lambda b: (0, 0, 0)),
            pl.BlockSpec((2, C, C), lambda b: (0, 0, 0)),
            pl.BlockSpec((2, C, 1), lambda b: (0, 0, 0)),
            pl.BlockSpec((2, C, 1), lambda b: (0, 0, 0)),
        ],
        out_specs=pl.BlockSpec((1, C, N), lambda b: (b, 0, 0)),
        scratch_shapes=[pltpu.VMEM((N, C), jnp.float32)],
        compiler_params=pltpu.CompilerParams(
            dimension_semantics=("parallel",),
            vmem_limit_bytes=_VMEM_LIMIT),
    )(x_nc, y_nc, prep["wqkv"], prep["wproj"], prep["bproj"],
      prep["wout"], prep["bn_sc"], prep["bn_sh"])


# --------------------------------------------------------------------------
# Glue: adaptive-avg-pool as a fixed (K, N) averaging matrix (exact
# AdaptiveAvgPool2d semantics, including non-divisible bins).
# --------------------------------------------------------------------------
def adaptive_pool_matrix(H, W, bin_size):
    bh, bw = bin_size
    P = np.zeros((bh * bw, H * W), dtype=np.float32)
    for i in range(bh):
        hs, he = (i * H) // bh, -((-(i + 1) * H) // bh)
        for j in range(bw):
            ws, we = (j * W) // bw, -((-(j + 1) * W) // bw)
            inv = 1.0 / ((he - hs) * (we - ws))
            for r in range(hs, he):
                for c in range(ws, we):
                    P[i * bw + j, r * W + c] = inv
    return jnp.asarray(P)


# --------------------------------------------------------------------------
# One-time param prep: fold softmax scale + merge qkv slices, fold BN(eval),
# pre-cast every weight to bf16, stack x/y branch weights along a leading axis.
# --------------------------------------------------------------------------
def prepare_params(params, num_heads):
    C = params["x"]["w_proj"].shape[0]
    scale = (C // num_heads) ** (-0.5)

    def branch(p):
        # q comes from qkv_r, k/v come from qkv_f (reference semantics).
        wqkv = jnp.concatenate([p["w_qkv_r"][:, :C] * scale,
                                p["w_qkv_f"][:, C:]], axis=1)        # (C, 3C)
        bn_sc = p["bn_gamma"] / jnp.sqrt(p["bn_var"] + 1e-5)
        bn_sh = p["bn_beta"] - p["bn_mean"] * bn_sc
        return dict(
            wqkv=wqkv.astype(jnp.bfloat16),
            wproj=p["w_proj"].astype(jnp.bfloat16),
            bproj=p["b_proj"].reshape(1, C).astype(jnp.float32),
            wout=p["w_out"].astype(jnp.bfloat16),
            bn_sc=bn_sc.reshape(C, 1).astype(jnp.float32),
            bn_sh=bn_sh.reshape(C, 1).astype(jnp.float32),
            w_cam_t=jnp.transpose(p["w_cam"]).astype(jnp.bfloat16),  # (nc, C)
            b_cam=p["b_cam"].reshape(-1, 1).astype(jnp.float32),     # (nc, 1)
        )

    bx, by = branch(params["x"]), branch(params["y"])
    return {k: jnp.stack([bx[k], by[k]]) for k in bx}


# --------------------------------------------------------------------------
# CAAM_WBY forward
# --------------------------------------------------------------------------
def caam_wby_forward(prep, x, y, pool_t, bin_size, num_heads=4):
    B, C, H, W = x.shape
    N = H * W
    bh, bw = bin_size
    assert H == W, "MAttention reshapes with sqrt(N); square maps required"
    assert C % num_heads == 0
    # TODO(synk): generalize the in-kernel raw (N,C)->(C,N) reshape to N % C != 0.
    assert N % C == 0 and N >= C

    # ---- CAM path: raw channel-major views, single fused dual-branch call ----
    cls = cam_pool_sigmoid_dual(x.reshape(B, C, N), y.reshape(B, C, N),
                                pool_t, prep["w_cam_t"], prep["b_cam"])   # (B, nc, K)
    cls = cls.reshape(B, -1, bh, bw)

    # ---- MAttention + conv_out + BN + ReLU + add: one fused call ----
    # PyTorch does a RAW reshape NCHW -> (B, H*W, C); free bitcast here.
    out_cn = fused_mattn_conv_bn_relu_add(x.reshape(B, N, C), y.reshape(B, N, C),
                                          prep, num_heads)                # (B, C, N)
    out = out_cn.reshape(B, C, H, W)
    return out, cls


# --------------------------------------------------------------------------
# Deterministic synthetic parameter init (shapes follow CAAM_WBY.__init__)
#   w_cam    : (Cin, nc)     -- conv_cam weight, transposed (1x1)
#   w_qkv_*  : (Cin, 3*Cin)  -- linear weights, transposed, columns = [q|k|v]
#   w_proj   : (Cin, Cin)    -- proj linear weight, transposed
#   w_out    : (Cout, Cin)   -- conv_out[0] weight (natural orientation)
# --------------------------------------------------------------------------
def init_params(key, feat_in, num_classes):
    keys = jax.random.split(key, 32)
    it = iter(keys)

    def nrm(shape, scale=0.05):
        return scale * jax.random.normal(next(it), shape, dtype=jnp.float32)

    def branch_params():
        return dict(
            w_cam=nrm((feat_in, num_classes)),
            b_cam=nrm((num_classes,)),
            w_qkv_r=nrm((feat_in, 3 * feat_in)),
            w_qkv_f=nrm((feat_in, 3 * feat_in)),
            w_proj=nrm((feat_in, feat_in)),
            b_proj=nrm((feat_in,)),
            w_out=nrm((feat_in, feat_in)),
            bn_gamma=1.0 + nrm((feat_in,)),
            bn_beta=nrm((feat_in,)),
            bn_mean=nrm((feat_in,)),
            bn_var=1.0 + jnp.abs(nrm((feat_in,))),
        )

    return dict(x=branch_params(), y=branch_params())


if __name__ == "__main__":
    # feat_in=32 (divisible by num_heads=4), H=W=16 -> N=256 (multiple of 128,
    # lane-dense stores; N % C == 0 for the in-kernel raw reshape).
    B, C, H, W = 2, 32, 16, 16
    num_classes = 2
    bin_size = (2, 2)
    num_heads = 4

    key = jax.random.PRNGKey(0)
    kx, ky, kp = jax.random.split(key, 3)
    x = jax.random.normal(kx, (B, C, H, W), dtype=jnp.float32)
    y = jax.random.normal(ky, (B, C, H, W), dtype=jnp.float32)

    raw_params = init_params(kp, C, num_classes)
    prep = prepare_params(raw_params, num_heads)
    pool_t = adaptive_pool_matrix(H, W, bin_size).astype(jnp.bfloat16)

    out, cls_score = caam_wby_forward(prep, x, y, pool_t, bin_size, num_heads)
    jax.block_until_ready((out, cls_score))

    assert out.shape == (B, C, H, W), out.shape
    assert cls_score.shape == (B, num_classes, bin_size[0], bin_size[1]), cls_score.shape
    assert out.dtype == jnp.float32 and cls_score.dtype == jnp.float32
    assert bool(jnp.all(jnp.isfinite(out))) and bool(jnp.all(jnp.isfinite(cls_score)))
    print("KERNEL_OK")
</pallas_src>

<mosaic_0001>
module attributes {stable_mosaic.version = 11 : i64} {
  func.func @_cam_dual_kernel(%arg0: i32, %arg1: memref<1x32x256xf32, #tpu.memory_space<vmem>>, %arg2: memref<1x32x256xf32, #tpu.memory_space<vmem>>, %arg3: memref<4x256xbf16, #tpu.memory_space<vmem>>, %arg4: memref<2x2x32xbf16, #tpu.memory_space<vmem>>, %arg5: memref<2x2x1xf32, #tpu.memory_space<vmem>>, %arg6: memref<1x2x4xf32, #tpu.memory_space<vmem>>) attributes {dimension_semantics = [#tpu.dimension_semantics<parallel>], iteration_bounds = array<i64: 2>, scalar_prefetch = 0 : i64, scratch_operands = 0 : i64, tpu.core_type = #tpu.core_type<tc>, window_params = [{transform_indices = @transform_0, window_bounds = array<i64: 1, 32, 256>}, {transform_indices = @transform_1, window_bounds = array<i64: 1, 32, 256>}, {pipeline_mode = #tpu.pipeline_mode<synchronous>, transform_indices = @transform_2, window_bounds = array<i64: 4, 256>}, {pipeline_mode = #tpu.pipeline_mode<synchronous>, transform_indices = @transform_3, window_bounds = array<i64: 2, 2, 32>}, {pipeline_mode = #tpu.pipeline_mode<synchronous>, transform_indices = @transform_4, window_bounds = array<i64: 2, 2, 1>}, {transform_indices = @transform_5, window_bounds = array<i64: 1, 2, 4>}]} {
    %c0 = arith.constant 0 : index
    %c0_0 = arith.constant 0 : index
    %c0_1 = arith.constant 0 : index
    %0 = vector.load %arg1[%c0, %c0_0, %c0_1] : memref<1x32x256xf32, #tpu.memory_space<vmem>>, vector<1x32x256xf32>
    %1 = vector.shape_cast %0 : vector<1x32x256xf32> to vector<32x256xf32>
    %c0_2 = arith.constant 0 : index
    %c0_3 = arith.constant 0 : index
    %c0_4 = arith.constant 0 : index
    %2 = vector.load %arg2[%c0_2, %c0_3, %c0_4] : memref<1x32x256xf32, #tpu.memory_space<vmem>>, vector<1x32x256xf32>
    %3 = vector.shape_cast %2 : vector<1x32x256xf32> to vector<32x256xf32>
    %4 = tpu.concatenate %1, %3 in 0 : vector<32x256xf32>, vector<32x256xf32> -> vector<64x256xf32>
    %5 = arith.truncf %4 : vector<64x256xf32> to vector<64x256xbf16>
    %c0_5 = arith.constant 0 : index
    %c0_6 = arith.constant 0 : index
    %6 = vector.load %arg3[%c0_5, %c0_6] : memref<4x256xbf16, #tpu.memory_space<vmem>>, vector<4x256xbf16>
    %cst = arith.constant dense<0.000000e+00> : vector<64x4xf32>
    %7 = tpu.matmul %5, %6, %cst {dimension_numbers = #tpu.dot_dimension_numbers<[1], [1], [0], [0], [0, 0, 1, 0], [], []>} : vector<64x256xbf16>, vector<4x256xbf16>, vector<64x4xf32> -> vector<64x4xf32>
    %8 = vector.extract_strided_slice %7 {offsets = [0, 0], sizes = [32, 4], strides = [1, 1]} : vector<64x4xf32> to vector<32x4xf32>
    %9 = arith.truncf %8 : vector<32x4xf32> to vector<32x4xbf16>
    %10 = vector.extract_strided_slice %7 {offsets = [32, 0], sizes = [32, 4], strides = [1, 1]} : vector<64x4xf32> to vector<32x4xf32>
    %11 = arith.truncf %10 : vector<32x4xf32> to vector<32x4xbf16>
    %c0_7 = arith.constant 0 : index
    %c0_8 = arith.constant 0 : index
    %c0_9 = arith.constant 0 : index
    %12 = vector.load %arg4[%c0_7, %c0_8, %c0_9] : memref<2x2x32xbf16, #tpu.memory_space<vmem>>, vector<1x2x32xbf16>
    %13 = vector.shape_cast %12 : vector<1x2x32xbf16> to vector<2x32xbf16>
    %cst_10 = arith.constant dense<0.000000e+00> : vector<2x4xf32>
    %14 = tpu.matmul %13, %9, %cst_10 {dimension_numbers = #tpu.dot_dimension_numbers<[1], [0], [0], [1], [0, 0, 1, 1], [], []>} : vector<2x32xbf16>, vector<32x4xbf16>, vector<2x4xf32> -> vector<2x4xf32>
    %c0_11 = arith.constant 0 : index
    %c0_12 = arith.constant 0 : index
    %c0_13 = arith.constant 0 : index
    %15 = vector.load %arg5[%c0_11, %c0_12, %c0_13] : memref<2x2x1xf32, #tpu.memory_space<vmem>>, vector<1x2x1xf32>
    %16 = vector.shape_cast %15 : vector<1x2x1xf32> to vector<2x1xf32>
    %17 = vector.broadcast %16 : vector<2x1xf32> to vector<2x4xf32>
    %18 = arith.addf %14, %17 : vector<2x4xf32>
    %c1 = arith.constant 1 : index
    %c0_14 = arith.constant 0 : index
    %c0_15 = arith.constant 0 : index
    %19 = vector.load %arg4[%c1, %c0_14, %c0_15] : memref<2x2x32xbf16, #tpu.memory_space<vmem>>, vector<1x2x32xbf16>
    %20 = vector.shape_cast %19 : vector<1x2x32xbf16> to vector<2x32xbf16>
    %cst_16 = arith.constant dense<0.000000e+00> : vector<2x4xf32>
    %21 = tpu.matmul %20, %11, %cst_16 {dimension_numbers = #tpu.dot_dimension_numbers<[1], [0], [0], [1], [0, 0, 1, 1], [], []>} : vector<2x32xbf16>, vector<32x4xbf16>, vector<2x4xf32> -> vector<2x4xf32>
    %c1_17 = arith.constant 1 : index
    %c0_18 = arith.constant 0 : index
    %c0_19 = arith.constant 0 : index
    %22 = vector.load %arg5[%c1_17, %c0_18, %c0_19] : memref<2x2x1xf32, #tpu.memory_space<vmem>>, vector<1x2x1xf32>
    %23 = vector.shape_cast %22 : vector<1x2x1xf32> to vector<2x1xf32>
    %24 = vector.broadcast %23 : vector<2x1xf32> to vector<2x4xf32>
    %25 = arith.addf %21, %24 : vector<2x4xf32>
    %cst_20 = arith.constant 0.000000e+00 : f32
    %26 = vector.broadcast %cst_20 : f32 to vector<2x4xf32>
    %27 = arith.subf %26, %18 : vector<2x4xf32>
    %28 = math.exp %27 : vector<2x4xf32>
    %cst_21 = arith.constant 1.000000e+00 : f32
    %29 = vector.broadcast %cst_21 : f32 to vector<2x4xf32>
    %30 = arith.addf %29, %28 : vector<2x4xf32>
    %cst_22 = arith.constant 1.000000e+00 : f32
    %31 = vector.broadcast %cst_22 : f32 to vector<2x4xf32>
    %32 = arith.divf %31, %30 : vector<2x4xf32>
    %cst_23 = arith.constant 0.000000e+00 : f32
    %33 = vector.broadcast %cst_23 : f32 to vector<2x4xf32>
    %34 = arith.subf %33, %25 : vector<2x4xf32>
    %35 = math.exp %34 : vector<2x4xf32>
    %cst_24 = arith.constant 1.000000e+00 : f32
    %36 = vector.broadcast %cst_24 : f32 to vector<2x4xf32>
    %37 = arith.addf %36, %35 : vector<2x4xf32>
    %cst_25 = arith.constant 1.000000e+00 : f32
    %38 = vector.broadcast %cst_25 : f32 to vector<2x4xf32>
    %39 = arith.divf %38, %37 : vector<2x4xf32>
    %40 = arith.addf %32, %39 : vector<2x4xf32>
    %c0_26 = arith.constant 0 : index
    %c0_27 = arith.constant 0 : index
    %c0_28 = arith.constant 0 : index
    %41 = vector.load %arg6[%c0_26, %c0_27, %c0_28] : memref<1x2x4xf32, #tpu.memory_space<vmem>>, vector<1x2x4xf32>
    %42 = vector.shape_cast %41 : vector<1x2x4xf32> to vector<2x4xf32>
    %43 = vector.shape_cast %40 : vector<2x4xf32> to vector<1x2x4xf32>
    tpu.vector_store %arg6[%c0_26, %c0_27, %c0_28], %43 {strides = array<i32>} : memref<1x2x4xf32, #tpu.memory_space<vmem>>, vector<1x2x4xf32>,
    return
  }
  func.func @transform_0(%arg0: i32) -> (i32, i32, i32) {
    %c0_i32 = arith.constant 0 : i32
    %c0_i32_0 = arith.constant 0 : i32
    %c0_i32_1 = arith.constant 0 : i32
    return %arg0, %c0_i32, %c0_i32_0 : i32, i32, i32
  }
  func.func @transform_1(%arg0: i32) -> (i32, i32, i32) {
    %c0_i32 = arith.constant 0 : i32
    %c0_i32_0 = arith.constant 0 : i32
    %c0_i32_1 = arith.constant 0 : i32
    return %arg0, %c0_i32, %c0_i32_0 : i32, i32, i32
  }
  func.func @transform_2(%arg0: i32) -> (i32, i32) {
    %c0_i32 = arith.constant 0 : i32
    %c0_i32_0 = arith.constant 0 : i32
    %c0_i32_1 = arith.constant 0 : i32
    return %c0_i32, %c0_i32_0 : i32, i32
  }
  func.func @transform_3(%arg0: i32) -> (i32, i32, i32) {
    %c0_i32 = arith.constant 0 : i32
    %c0_i32_0 = arith.constant 0 : i32
    %c0_i32_1 = arith.constant 0 : i32
    %c0_i32_2 = arith.constant 0 : i32
    return %c0_i32, %c0_i32_0, %c0_i32_1 : i32, i32, i32
  }
  func.func @transform_4(%arg0: i32) -> (i32, i32, i32) {
    %c0_i32 = arith.constant 0 : i32
    %c0_i32_0 = arith.constant 0 : i32
    %c0_i32_1 = arith.constant 0 : i32
    %c0_i32_2 = arith.constant 0 : i32
    return %c0_i32, %c0_i32_0, %c0_i32_1 : i32, i32, i32
  }
  func.func @transform_5(%arg0: i32) -> (i32, i32, i32) {
    %c0_i32 = arith.constant 0 : i32
    %c0_i32_0 = arith.constant 0 : i32
    %c0_i32_1 = arith.constant 0 : i32
    return %arg0, %c0_i32, %c0_i32_0 : i32, i32, i32
  }
}

</mosaic_0001>

<llo_original>
// kernel: tpu_custom_call.1
$region0: #{tpu_custom_call.1}
  #allocation0 [shape = 'u32[]', space=smem, size = 0x4, offset = 0x4, fixed_abs, tag = 'smem constant byte address 0x4 - core index']
  #allocation1 [shape = 'u32[72,128]{1,0:T(1,128)}', space=vmem, size = 0x9000, scoped, tag = 'internal scratch']
  %s0 = inlined_call_operand.hbm [shape: f32[2,32,256], index: 0, kind: input, shape index: {}]
  %s1 = inlined_call_operand.hbm [shape: f32[2,32,256], index: 1, kind: input, shape index: {}]
  %s2 = inlined_call_operand.vmem [shape: bf16[4,256], index: 2, kind: input, shape index: {}]
  %s3 = inlined_call_operand.vmem [shape: bf16[2,2,32], index: 3, kind: input, shape index: {}]
  %s4 = inlined_call_operand.vmem [shape: f32[2,2,1], index: 4, kind: input, shape index: {}]
  %s5 = inlined_call_operand.hbm [shape: f32[2,2,4], index: 5, kind: output, shape index: {}]
  %s6 = sld [smem:[#allocation0]]
  $region61: #{tpu_custom_call.1} parent=0
    _
  %s8 = ssub.s32 1, %s6
  %s9 = scalar_select 0, %s8, %s6
  $region1: #{tpu_custom_call.1} parent=0
    #allocation2 [shape = 'u8[65536]{0}', space=vmem, size = 0x10000, scoped, tag = 'input window, operand 0']
    #allocation3 [shape = 's32[2]{0}', space=sflag, size = 0x8, scoped, tag = 'scoped memory for tpu_custom_call.1']
    #allocation4 [shape = 's32[2]{0}', space=sflag, size = 0x8, scoped, tag = 'scoped memory for tpu_custom_call.1']
    #allocation5 [shape = 'u8[65536]{0}', space=vmem, size = 0x10000, scoped, tag = 'input window, operand 1']
    #allocation6 [shape = 's32[2]{0}', space=sflag, size = 0x8, scoped, tag = 'scoped memory for tpu_custom_call.1']
    #allocation7 [shape = 'u8[2048]{0}', space=vmem, size = 0x800, scoped, tag = 'output window, operand 0']
    %10 = vsyncpa [#allocation3], 0
    %s11 = scalar_lea.sflag [#allocation3], 1
    %12 = vsyncpa %s11, 0
    %13 = vsyncpa [#allocation6], 0
    %s14 = scalar_lea.sflag [#allocation6], 1
    %15 = vsyncpa %s14, 0
    %16 = vsyncpa [#allocation4], 0
    %s17 = scalar_lea.sflag [#allocation4], 1
    %18 = vsyncpa %s17, 0
    loop: start=0, step=1, limit=4
    $region2: #{tpu_custom_call.1} parent=1 // loop_pre_header
      _
    $region3: #{tpu_custom_call.1} parent=1 // loop_header
      %s20 = sphi 0, %s24
      %p21 = scmp.ge.s32.totalorder %s20, 4
      %s30 = sphi 0, %s32
      %s33 = sphi 0, %s30
      %s34 = sphi 0, %s33
      %s50 = sphi 0, %s34
      %s56 = sphi 0, %s58
      %s59 = sphi 0, %s56
      %s60 = sphi 0, %s59
      %s76 = sphi 0, %s60
      %s80 = sphi 0, %s80
      %s82 = sphi 0, %s80
      %s83 = sphi 0, %s82
      %s97 = sphi 0, %s83
      %s101 = sphi 0, %s101
      %s103 = sphi 0, %s101
      %s104 = sphi 0, %s103
      %s118 = sphi 0, %s104
      %s122 = sphi 0, %s122
      %s124 = sphi 0, %s122
      %s125 = sphi 0, %s124
      %s139 = sphi 0, %s125
      %s145 = sphi 0, %s147
      %s148 = sphi 0, %s145
      %s149 = sphi 0, %s148
      %s165 = sphi 0, %s149
    $region4: #{tpu_custom_call.1} parent=1 // loop_header_branch
      %23 = sbr.rel (%p21) target = $region8
    $region5: #{tpu_custom_call.1} parent=1 // loop_body
      %s25 = ssub.s32 %s20, 1
      %s26 = ssub.s32 %s20, 2
      %s27 = sadd.s32 %s20, 1
      %s28 = ssub.s32 %s20, %s27
      %p29 = scmp.eq.s32.totalorder %s28, 0
      %s31 = sadd.s32 %s30, 1
      %s32 = scalar_select %p29, %s30, %s31
      %p35 = pneg %p29
      %p36 = scmp.eq.s32.totalorder %s20, 1
      %p37 = por %p35, %p36
      %p38 = scmp.ne.s32.totalorder %s30, %s33
      %p39 = scmp.eq.s32.totalorder %s20, 0
      %p40 = por %p38, %p39
      %p41 = scmp.ne.s32.totalorder %s30, %s33
      %p42 = scmp.eq.s32.totalorder %s25, 1
      %p43 = por %p41, %p42
      %p44 = scmp.ne.s32.totalorder %s33, %s34
      %p45 = scmp.eq.s32.totalorder %s25, 0
      %p46 = por %p44, %p45
      %p47 = scmp.ne.s32.totalorder %s33, %s34
      %p48 = scmp.eq.s32.totalorder %s26, 1
      %p49 = por %p47, %p48
      %p51 = scmp.ne.s32.totalorder %s34, %s50
      %p52 = scmp.eq.s32.totalorder %s26, 0
      %p53 = por %p51, %p52
      %s54 = ssub.s32 %s20, %s27
      %p55 = scmp.eq.s32.totalorder %s54, 0
      %s57 = sadd.s32 %s56, 1
      %s58 = scalar_select %p55, %s56, %s57
      %p61 = pneg %p55
      %p62 = scmp.eq.s32.totalorder %s20, 1
      %p63 = por %p61, %p62
      %p64 = scmp.ne.s32.totalorder %s56, %s59
      %p65 = scmp.eq.s32.totalorder %s20, 0
      %p66 = por %p64, %p65
      %p67 = scmp.ne.s32.totalorder %s56, %s59
      %p68 = scmp.eq.s32.totalorder %s25, 1
      %p69 = por %p67, %p68
      %p70 = scmp.ne.s32.totalorder %s59, %s60
      %p71 = scmp.eq.s32.totalorder %s25, 0
      %p72 = por %p70, %p71
      %p73 = scmp.ne.s32.totalorder %s59, %s60
      %p74 = scmp.eq.s32.totalorder %s26, 1
      %p75 = por %p73, %p74
      %p77 = scmp.ne.s32.totalorder %s60, %s76
      %p78 = scmp.eq.s32.totalorder %s26, 0
      %p79 = por %p77, %p78
      %s81 = sadd.s32 %s80, 1
      %p84 = scmp.eq.s32.totalorder %s20, 1
      %p85 = scmp.ne.s32.totalorder %s80, %s82
      %p86 = scmp.eq.s32.totalorder %s20, 0
      %p87 = por %p85, %p86
      %p88 = scmp.ne.s32.totalorder %s80, %s82
      %p89 = scmp.eq.s32.totalorder %s25, 1
      %p90 = por %p88, %p89
      %p91 = scmp.ne.s32.totalorder %s82, %s83
      %p92 = scmp.eq.s32.totalorder %s25, 0
      %p93 = por %p91, %p92
      %p94 = scmp.ne.s32.totalorder %s82, %s83
      %p95 = scmp.eq.s32.totalorder %s26, 1
      %p96 = por %p94, %p95
      %p98 = scmp.ne.s32.totalorder %s83, %s97
      %p99 = scmp.eq.s32.totalorder %s26, 0
      %p100 = por %p98, %p99
      %s102 = sadd.s32 %s101, 1
      %p105 = scmp.eq.s32.totalorder %s20, 1
      %p106 = scmp.ne.s32.totalorder %s101, %s103
      %p107 = scmp.eq.s32.totalorder %s20, 0
      %p108 = por %p106, %p107
      %p109 = scmp.ne.s32.totalorder %s101, %s103
      %p110 = scmp.eq.s32.totalorder %s25, 1
      %p111 = por %p109, %p110
      %p112 = scmp.ne.s32.totalorder %s103, %s104
      %p113 = scmp.eq.s32.totalorder %s25, 0
      %p114 = por %p112, %p113
      %p115 = scmp.ne.s32.totalorder %s103, %s104
      %p116 = scmp.eq.s32.totalorder %s26, 1
      %p117 = por %p115, %p116
      %p119 = scmp.ne.s32.totalorder %s104, %s118
      %p120 = scmp.eq.s32.totalorder %s26, 0
      %p121 = por %p119, %p120
      %s123 = sadd.s32 %s122, 1
      %p126 = scmp.eq.s32.totalorder %s20, 1
      %p127 = scmp.ne.s32.totalorder %s122, %s124
      %p128 = scmp.eq.s32.totalorder %s20, 0
      %p129 = por %p127, %p128
      %p130 = scmp.ne.s32.totalorder %s122, %s124
      %p131 = scmp.eq.s32.totalorder %s25, 1
      %p132 = por %p130, %p131
      %p133 = scmp.ne.s32.totalorder %s124, %s125
      %p134 = scmp.eq.s32.totalorder %s25, 0
      %p135 = por %p133, %p134
      %p136 = scmp.ne.s32.totalorder %s124, %s125
      %p137 = scmp.eq.s32.totalorder %s26, 1
      %p138 = por %p136, %p137
      %p140 = scmp.ne.s32.totalorder %s125, %s139
      %p141 = scmp.eq.s32.totalorder %s26, 0
      %p142 = por %p140, %p141
      %s143 = ssub.s32 %s20, %s27
      %p144 = scmp.eq.s32.totalorder %s143, 0
      %s146 = sadd.s32 %s145, 1
      %s147 = scalar_select %p144, %s145, %s146
      %p150 = pneg %p144
      %p151 = scmp.eq.s32.totalorder %s20, 1
      %p152 = por %p150, %p151
      %p153 = scmp.ne.s32.totalorder %s145, %s148
      %p154 = scmp.eq.s32.totalorder %s20, 0
      %p155 = por %p153, %p154
      %p156 = scmp.ne.s32.totalorder %s145, %s148
      %p157 = scmp.eq.s32.totalorder %s25, 1
      %p158 = por %p156, %p157
      %p159 = scmp.ne.s32.totalorder %s148, %s149
      %p160 = scmp.eq.s32.totalorder %s25, 0
      %p161 = por %p159, %p160
      %p162 = scmp.ne.s32.totalorder %s148, %s149
      %p163 = scmp.eq.s32.totalorder %s26, 1
      %p164 = por %p162, %p163
      %p166 = scmp.ne.s32.totalorder %s149, %s165
      %p167 = scmp.eq.s32.totalorder %s26, 0
      %p168 = por %p166, %p167
      %p169 = scmp.le.s32.totalorder 1, %s20
      %p170 = scmp.lt.s32.totalorder %s20, 3
      %p171 = pnand %p169, %p170
      %p172 = pneg %p171
      // Predicated region
      $region9: #{tpu_custom_call.1} parent=5 // pred_check
        _
      $region10: #{tpu_custom_call.1} parent=5 // pred_check_branch
        %174 = sbr.rel (%p171) target = $region12
      $region11: #{tpu_custom_call.1} parent=5 // pred_region
        %s175 = ssub.s32 %s20, 1
        // Predicated region
        $region13: #{tpu_custom_call.1} parent=11 // pred_check
          %p176 = pneg %p93
        $region14: #{tpu_custom_call.1} parent=11 // pred_check_branch
          %178 = sbr.rel (%p176) target = $region16
        $region15: #{tpu_custom_call.1} parent=11 // pred_region
          _
        $region16: #{tpu_custom_call.1} parent=11 // pred_fallthru
          _
        // Predicated region
        $region17: #{tpu_custom_call.1} parent=11 // pred_check
          %p179 = pneg %p114
        $region18: #{tpu_custom_call.1} parent=11 // pred_check_branch
          %181 = sbr.rel (%p179) target = $region20
        $region19: #{tpu_custom_call.1} parent=11 // pred_region
          _
        $region20: #{tpu_custom_call.1} parent=11 // pred_fallthru
          _
        // Predicated region
        $region21: #{tpu_custom_call.1} parent=11 // pred_check
          %p182 = pneg %p135
        $region22: #{tpu_custom_call.1} parent=11 // pred_check_branch
          %184 = sbr.rel (%p182) target = $region24
        $region23: #{tpu_custom_call.1} parent=11 // pred_region
          _
        $region24: #{tpu_custom_call.1} parent=11 // pred_fallthru
          _
      $region12: #{tpu_custom_call.1} parent=5 // pred_fallthru
        _
      %p185 = scmp.lt.s32.totalorder %s20, 2
      // Predicated region
      $region25: #{tpu_custom_call.1} parent=5 // pred_check
        %p186 = pneg %p185
      $region26: #{tpu_custom_call.1} parent=5 // pred_check_branch
        %188 = sbr.rel (%p186) target = $region28
      $region27: #{tpu_custom_call.1} parent=5 // pred_region
        // Predicated region
        $region29: #{tpu_custom_call.1} parent=27 // pred_check
          %p189 = pneg %p40
        $region30: #{tpu_custom_call.1} parent=27 // pred_check_branch
          %191 = sbr.rel (%p189) target = $region32
        $region31: #{tpu_custom_call.1} parent=27 // pred_region
          %s192 = sand.u32 %s30, 1
          %s193 = scalar_lea.sflag [#allocation3], %s192
          %s194 = sand.u32 %s30, 1
          %s195 = smul.addr %s194, 64
          %s196 = scalar_lea.vmem [#allocation2], %s195
          %198 = vsyncadd %s193, 0
          %s199 = smul.addr %s20, 8
          %s200 = smul.addr %s199, 8
          %s201 = scalar_lea.hbm %s0, %s200
          %s202 = sshll.u32 %s201, 4
          %s203 = int_to_ptr.hbm [resolvable:$true] %s202
          %s204 = sshll.u32 %s196, 4
          %s205 = int_to_ptr.vmem [resolvable:$true] %s204
          %210 = dma.hbm_to_vmem [thread:$0]  %s203, 1024, %s205, %s193, 256, 256, 16
        $region32: #{tpu_custom_call.1} parent=27 // pred_fallthru
          _
        // Predicated region
        $region33: #{tpu_custom_call.1} parent=27 // pred_check
          %p211 = pneg %p66
        $region34: #{tpu_custom_call.1} parent=27 // pred_check_branch
          %213 = sbr.rel (%p211) target = $region36
        $region35: #{tpu_custom_call.1} parent=27 // pred_region
          %s214 = sand.u32 %s56, 1
          %s215 = scalar_lea.sflag [#allocation6], %s214
          %s216 = sand.u32 %s56, 1
          %s217 = smul.addr %s216, 64
          %s218 = scalar_lea.vmem [#allocation5], %s217
          %220 = vsyncadd %s215, 0
          %s221 = smul.addr %s20, 8
          %s222 = smul.addr %s221, 8
          %s223 = scalar_lea.hbm %s1, %s222
          %s224 = sshll.u32 %s223, 4
          %s225 = int_to_ptr.hbm [resolvable:$true] %s224
          %s226 = sshll.u32 %s218, 4
          %s227 = int_to_ptr.vmem [resolvable:$true] %s226
          %232 = dma.hbm_to_vmem [thread:$0]  %s225, 1024, %s227, %s215, 256, 256, 16
        $region36: #{tpu_custom_call.1} parent=27 // pred_fallthru
          _
      $region28: #{tpu_custom_call.1} parent=5 // pred_fallthru
        _
      %p233 = scmp.le.s32.totalorder 1, %s20
      %p234 = scmp.lt.s32.totalorder %s20, 3
      %p235 = pnand %p233, %p234
      %p236 = pneg %p235
      // Predicated region
      $region37: #{tpu_custom_call.1} parent=5 // pred_check
        _
      $region38: #{tpu_custom_call.1} parent=5 // pred_check_branch
        %238 = sbr.rel (%p235) target = $region40
      $region39: #{tpu_custom_call.1} parent=5 // pred_region
        %s239 = ssub.s32 %s20, 1
        %s240 = sand.u32 %s33, 1
        %s241 = scalar_lea.sflag [#allocation3], %s240
        %s242 = sand.u32 %s33, 1
        %s243 = smul.addr %s242, 64
        %s244 = scalar_lea.vmem [#allocation2], %s243
        // Predicated region
        $region41: #{tpu_custom_call.1} parent=39 // pred_check
          %p245 = pneg %p46
        $region42: #{tpu_custom_call.1} parent=39 // pred_check_branch
          %247 = sbr.rel (%p245) target = $region44
        $region43: #{tpu_custom_call.1} parent=39 // pred_region
          %249 = dma.done %s241, 1024
        $region44: #{tpu_custom_call.1} parent=39 // pred_fallthru
          _
        %s250 = sand.u32 %s59, 1
        %s251 = scalar_lea.sflag [#allocation6], %s250
        %s252 = sand.u32 %s59, 1
        %s253 = smul.addr %s252, 64
        %s254 = scalar_lea.vmem [#allocation5], %s253
        // Predicated region
        $region45: #{tpu_custom_call.1} parent=39 // pred_check
          %p255 = pneg %p72
        $region46: #{tpu_custom_call.1} parent=39 // pred_check_branch
          %257 = sbr.rel (%p255) target = $region48
        $region47: #{tpu_custom_call.1} parent=39 // pred_region
          %259 = dma.done %s251, 1024
        $region48: #{tpu_custom_call.1} parent=39 // pred_fallthru
          _
        %s260 = sand.u32 %s33, 1
        %s261 = scalar_lea.sflag [#allocation3], %s260
        %s262 = sand.u32 %s33, 1
        %s263 = smul.addr %s262, 64
        %s264 = scalar_lea.vmem [#allocation2], %s263
        %p265 = pneg %p46
        %p266 = pneg %p43
        %s267 = sand.u32 %s59, 1
        %s268 = scalar_lea.sflag [#allocation6], %s267
        %s269 = sand.u32 %s59, 1
        %s270 = smul.addr %s269, 64
        %s271 = scalar_lea.vmem [#allocation5], %s270
        %p272 = pneg %p72
        %p273 = pneg %p69
        %p274 = pneg %p93
        %p275 = pneg %p90
        %p276 = pneg %p114
        %p277 = pneg %p111
        %p278 = pneg %p135
        %p279 = pneg %p132
        %p280 = pneg %p161
        %p281 = pneg %p158
        %s282 = sand.u32 %s148, 1
        %s283 = scalar_lea.sflag [#allocation4], %s282
        %s284 = sand.u32 %s148, 1
        %s285 = smul.addr %s284, 2
        %s286 = scalar_lea.vmem [#allocation7], %s285
        %v288 = vld [vmem:[%s244] sm:$0xff]
        %v289 = vld [vmem:[%s244 + $0x8] sm:$0xff]
        %v290 = vld [vmem:[%s244 + $0x10] sm:$0xff]
        %v291 = vld [vmem:[%s244 + $0x18] sm:$0xff]
        %v292 = vld [vmem:[%s244 + $0x20] sm:$0xff]
        %v293 = vld [vmem:[%s244 + $0x28] sm:$0xff]
        %v294 = vld [vmem:[%s244 + $0x30] sm:$0xff]
        %v295 = vld [vmem:[%s244 + $0x38] sm:$0xff]
        %v296 = vld [vmem:[%s254] sm:$0xff]
        %v297 = vld [vmem:[%s254 + $0x8] sm:$0xff]
        %v298 = vld [vmem:[%s254 + $0x10] sm:$0xff]
        %v299 = vld [vmem:[%s254 + $0x18] sm:$0xff]
        %v300 = vld [vmem:[%s254 + $0x20] sm:$0xff]
        %v301 = vld [vmem:[%s254 + $0x28] sm:$0xff]
        %v302 = vld [vmem:[%s254 + $0x30] sm:$0xff]
        %v303 = vld [vmem:[%s254 + $0x38] sm:$0xff]
        %v304 = vpack.c.bf16 %v290, %v288
        %v305 = vpack.c.bf16 %v291, %v289
        %v306 = vpack.c.bf16 %v294, %v292
        %v307 = vpack.c.bf16 %v295, %v293
        %v308 = vpack.c.bf16 %v298, %v296
        %v309 = vpack.c.bf16 %v299, %v297
        %v310 = vpack.c.bf16 %v302, %v300
        %v311 = vpack.c.bf16 %v303, %v301
        %v312 = vld [vmem:[%s2] sm:$0xf]
        %314 = vst [vmem:[#allocation1] ss:$4 sm:$0xff] %v312
        %v315 = vld.sshfl [vmem:[#allocation1] sm:$0xff pattern:$0x73625140]
        %v316 = vld.sshfl [vmem:[#allocation1 + $0x8] sm:$0xff pattern:$0x73625140]
        %319 = vmatpush.bf16.xpose.msra.mxu0 0
        %320 = vmatpush.bf16.xpose.msra.mxu0 0
        %321 = vmatpush.bf16.xpose.msra.mxu0 0
        %322 = vmatpush.bf16.xpose.msra.mxu0 0
        %323 = vmatpush.bf16.xpose.msra.mxu0 0
        %324 = vmatpush.bf16.xpose.msra.mxu0 0
        %325 = vmatpush.bf16.xpose.msra.mxu0 0
        %326 = vmatpush.bf16.xpose.msra.mxu0 %v315
        %327 = vmatmul.bf16.gmra.mxu0 %v304
        %v328 = vpop.f32.mrf.mxu0
        %v329 = vadd.f32 0.0, %v328
        %v330 = vpop.f32.mrf.mxu0
        %v331 = vadd.f32 0.0, %v330
        %332 = vmatmul.bf16.gmra.mxu0 %v306
        %v333 = vpop.f32.mrf.mxu0
        %v334 = vadd.f32 0.0, %v333
        %v335 = vpop.f32.mrf.mxu0
        %v336 = vadd.f32 0.0, %v335
        %337 = vmatmul.bf16.gmra.mxu0 %v308
        %v338 = vpop.f32.mrf.mxu0
        %v339 = vadd.f32 0.0, %v338
        %v340 = vpop.f32.mrf.mxu0
        %v341 = vadd.f32 0.0, %v340
        %342 = vmatmul.bf16.gmra.mxu0 %v310
        %v343 = vpop.f32.mrf.mxu0
        %v344 = vadd.f32 0.0, %v343
        %v345 = vpop.f32.mrf.mxu0
        %v346 = vadd.f32 0.0, %v345
        %347 = vdwg.mxu0
        %348 = vmatpush.bf16.xpose.msra.mxu0 0
        %349 = vmatpush.bf16.xpose.msra.mxu0 0
        %350 = vmatpush.bf16.xpose.msra.mxu0 0
        %351 = vmatpush.bf16.xpose.msra.mxu0 0
        %352 = vmatpush.bf16.xpose.msra.mxu0 0
        %353 = vmatpush.bf16.xpose.msra.mxu0 0
        %354 = vmatpush.bf16.xpose.msra.mxu0 0
        %355 = vmatpush.bf16.xpose.msra.mxu0 %v316
        %356 = vmatmul.bf16.gmra.mxu0 %v305
        %v357 = vpop.f32.mrf.mxu0
        %v358 = vadd.f32 %v329, %v357
        %v359 = vpop.f32.mrf.mxu0
        %v360 = vadd.f32 %v331, %v359
        %361 = vmatmul.bf16.gmra.mxu0 %v307
        %v362 = vpop.f32.mrf.mxu0
        %v363 = vadd.f32 %v334, %v362
        %v364 = vpop.f32.mrf.mxu0
        %v365 = vadd.f32 %v336, %v364
        %366 = vmatmul.bf16.gmra.mxu0 %v309
        %v367 = vpop.f32.mrf.mxu0
        %v368 = vadd.f32 %v339, %v367
        %v369 = vpop.f32.mrf.mxu0
        %v370 = vadd.f32 %v341, %v369
        %371 = vmatmul.bf16.gmra.mxu0 %v311
        %v372 = vpop.f32.mrf.mxu0
        %v373 = vadd.f32 %v344, %v372
        %v374 = vpop.f32.mrf.mxu0
        %v375 = vadd.f32 %v346, %v374
        %376 = vdwg.mxu0
        %v377 = vpack.c.bf16 %v360, %v358
        %v378 = vpack.c.bf16 %v365, %v363
        %v379 = vpack.c.bf16 %v370, %v368
        %v380 = vpack.c.bf16 %v375, %v373
        %v381 = vld [vmem:[%s3] sm:$0x1]
        %v382 = vld [vmem:[%s4] sm:$0x3]
        %384 = vset.pattern.permute.xlu0 0
        %385 = vperm.xlu0 %384, %v382
        %v386 = vpop.permute.xlu0 %385
        %vm388 = vcmask 261120
        %v390 = vsel %vm388, %v381, 0
        %392 = vmatpush.bf16.msra.mxu0 0
        %393 = vmatpush.bf16.msra.mxu0 0
        %394 = vmatpush.bf16.msra.mxu0 0
        %395 = vmatpush.bf16.msra.mxu0 0
        %396 = vmatpush.bf16.msra.mxu0 0
        %397 = vmatpush.bf16.msra.mxu0 0
        %398 = vmatpush.bf16.msra.mxu0 %v378
        %399 = vmatpush.bf16.msra.mxu0 %v377
        %400 = vmatmul.bf16.gmra.mxu0 %v390
        %v401 = vpop.f32.mrf.mxu0
        %v402 = vadd.f32 %v386, %v401
        %v403 = vpop.f32.mrf.mxu0
        %404 = vdwg.mxu0
        %s405 = scalar_lea.vmem %s3, 1
        %v406 = vld [vmem:[%s405] sm:$0x1]
        %s407 = scalar_lea.vmem %s4, 2
        %v408 = vld [vmem:[%s407] sm:$0x3]
        %410 = vset.pattern.permute.xlu0 0
        %411 = vperm.xlu0 %410, %v408
        %v412 = vpop.permute.xlu0 %411
        %v415 = vsel %vm388, %v406, 0
        %417 = vmatpush.bf16.msra.mxu0 0
        %418 = vmatpush.bf16.msra.mxu0 0
        %419 = vmatpush.bf16.msra.mxu0 0
        %420 = vmatpush.bf16.msra.mxu0 0
        %421 = vmatpush.bf16.msra.mxu0 0
        %422 = vmatpush.bf16.msra.mxu0 0
        %423 = vmatpush.bf16.msra.mxu0 %v380
        %424 = vmatpush.bf16.msra.mxu0 %v379
        %425 = vmatmul.bf16.gmra.mxu0 %v415
        %v426 = vpop.f32.mrf.mxu0
        %v427 = vadd.f32 %v412, %v426
        %v428 = vpop.f32.mrf.mxu0
        %429 = vdwg.mxu0
        %v430 = vsub.f32 0.0, %v402
        %v431 = vmul.f32 %v430, 1.442695
        %v432 = vpow.pop %v431
        %v433 = vadd.f32 %v432, 1.0
        %v434 = vrcp.pop %v433
        %v435 = vmul.f32 %v433, %v434
        %v436 = vsub.f32 1.0, %v435
        %v437 = vmul.f32 %v434, %v436
        %v438 = vadd.f32 %v434, %v437
        %vm439 = vweird.f32 %v433
        %vm440 = vweird.f32 %v434
        %vm441 = vmor %vm439, %vm440
        %v442 = vsel %vm441, %v434, %v438
        %v443 = vand.u32 2147483647, %v433
        %vm444 = vcmp.eq.f32.partialorder %v443, 8.507059e+37
        %v445 = vand.u32 %v433, 2147483648
        %v446 = vor.u32 1.1754944e-38, %v445
        %v447 = vsel %vm444, %v446, %v442
        %v448 = vmul.f32 1.0, %v447
        %v449 = vsub.f32 0.0, %v427
        %v450 = vmul.f32 %v449, 1.442695
        %v451 = vpow.pop %v450
        %v452 = vadd.f32 %v451, 1.0
        %v453 = vrcp.pop %v452
        %v454 = vmul.f32 %v452, %v453
        %v455 = vsub.f32 1.0, %v454
        %v456 = vmul.f32 %v453, %v455
        %v457 = vadd.f32 %v453, %v456
        %vm458 = vweird.f32 %v452
        %vm459 = vweird.f32 %v453
        %vm460 = vmor %vm458, %vm459
        %v461 = vsel %vm460, %v453, %v457
        %v462 = vand.u32 2147483647, %v452
        %vm463 = vcmp.eq.f32.partialorder %v462, 8.507059e+37
        %v464 = vand.u32 %v452, 2147483648
        %v465 = vor.u32 1.1754944e-38, %v464
        %v466 = vsel %vm463, %v465, %v461
        %v467 = vmul.f32 1.0, %v466
        %v468 = vadd.f32 %v448, %v467
        %vm469 = vcmask 25600
        %470 = vst.msk [vmem:[%s286] sm:$0x3] %vm469, %v468
        %s471 = sand.u32 %s148, 1
        %s472 = scalar_lea.sflag [#allocation4], %s471
        %s473 = sand.u32 %s148, 1
        %s474 = smul.addr %s473, 2
        %s475 = scalar_lea.vmem [#allocation7], %s474
        // Predicated region
        $region49: #{tpu_custom_call.1} parent=39 // pred_check
          %p476 = pneg %p158
        $region50: #{tpu_custom_call.1} parent=39 // pred_check_branch
          %478 = sbr.rel (%p476) target = $region52
        $region51: #{tpu_custom_call.1} parent=39 // pred_region
          %480 = vsyncadd %s472, 0
          %s481 = smul.addr %s25, 2
          %s482 = scalar_lea.hbm %s5, %s481
          %s484 = sshll.u32 %s475, 4
          %s485 = int_to_ptr.vmem [resolvable:$true] %s484
          %s486 = sshll.u32 %s482, 4
          %s487 = int_to_ptr.hbm [resolvable:$true] %s486
          %489 = dma.vmem_to_hbm [thread:$0]  %s485, 32, %s487, %s472
        $region52: #{tpu_custom_call.1} parent=39 // pred_fallthru
          _
      $region40: #{tpu_custom_call.1} parent=5 // pred_fallthru
        _
      %p490 = scmp.le.s32.totalorder 2, %s20
      // Predicated region
      $region53: #{tpu_custom_call.1} parent=5 // pred_check
        %p491 = pneg %p490
      $region54: #{tpu_custom_call.1} parent=5 // pred_check_branch
        %493 = sbr.rel (%p491) target = $region56
      $region55: #{tpu_custom_call.1} parent=5 // pred_region
        %s494 = ssub.s32 %s20, 2
        // Predicated region
        $region57: #{tpu_custom_call.1} parent=55 // pred_check
          %p495 = pneg %p164
        $region58: #{tpu_custom_call.1} parent=55 // pred_check_branch
          %497 = sbr.rel (%p495) target = $region60
        $region59: #{tpu_custom_call.1} parent=55 // pred_region
          %s498 = sand.u32 %s149, 1
          %s499 = scalar_lea.sflag [#allocation4], %s498
          %s500 = sand.u32 %s149, 1
          %s501 = smul.addr %s500, 2
          %s502 = scalar_lea.vmem [#allocation7], %s501
          %504 = dma.done %s499, 32
        $region60: #{tpu_custom_call.1} parent=55 // pred_fallthru
          _
      $region56: #{tpu_custom_call.1} parent=5 // pred_fallthru
        _
    $region6: #{tpu_custom_call.1} parent=1 // loop_footer
      %s24 = sadd.s32 1, %s20
    $region7: #{tpu_custom_call.1} parent=1 // loop_footer_branch
      %19 = sbr.rel target = $region3
    $region8: #{tpu_custom_call.1} parent=1 // loop_exit
      _
    %505 = vsyncpa [#allocation3], 1
    %s506 = scalar_lea.sflag [#allocation3], 1
    %507 = vsyncpa %s506, 1
    %508 = vsyncpa [#allocation6], 1
    %s509 = scalar_lea.sflag [#allocation6], 1
    %510 = vsyncpa %s509, 1
    %511 = vsyncpa [#allocation4], 1
    %s512 = scalar_lea.sflag [#allocation4], 1
    %513 = vsyncpa %s512, 1

</llo_original>
